<compile_context>
chip_gen: v7x
topology: tpu7x:2x2x1
jax: 0.10.0
libtpu: 0.0.40
codegen_flags: <defaults>
</compile_context>

<pallas_src>
import functools

import jax
import jax.numpy as jnp
from jax.experimental import pallas as pl
from jax.experimental.pallas import tpu as pltpu

LATENT_SIZE = 64
HIDDEN_SIZE = 256
IMAGE_SIZE = 784
IMAGE_PAD = 896      # 7 * 128: lane-dense padding of the 784-wide output


def _round_up(x, m):
    return (x + m - 1) // m * m


def _generator_kernel(z_ref, w1_ref, b1_ref, w2_ref, b2_ref, w3_ref, b3_ref, o_ref):
    # Layer 1: Linear(64 -> 256) + ReLU   (bf16 operands, f32 accumulate)
    h1 = jnp.dot(z_ref[...], w1_ref[...], preferred_element_type=jnp.float32)
    h1 = jnp.maximum(h1 + b1_ref[...], 0.0)
    # Layer 2: Linear(256 -> 256) + ReLU
    h2 = jnp.dot(h1.astype(jnp.bfloat16), w2_ref[...],
                 preferred_element_type=jnp.float32)
    h2 = jnp.maximum(h2 + b2_ref[...], 0.0)
    # Layer 3: Linear(256 -> 896[784 padded]) + Tanh
    h3 = jnp.dot(h2.astype(jnp.bfloat16), w3_ref[...],
                 preferred_element_type=jnp.float32)
    o_ref[...] = jnp.tanh(h3 + b3_ref[...]).astype(o_ref.dtype)


@functools.partial(jax.jit, static_argnames=("batch_tile", "out_dtype"))
def generator_forward(z, params, *, batch_tile=512, out_dtype=jnp.bfloat16):
    """Generator forward pass as a single fused Pallas kernel.

    z:      (B, LATENT_SIZE) float32 (or bf16)
    params: output of `prepare_params` (bf16 weights (in, out), f32 biases (1, out),
            layer 3 padded to IMAGE_PAD columns)
    Returns (B, IMAGE_SIZE) in `out_dtype`.
    """
    B = z.shape[0]
    assert z.shape[1] == LATENT_SIZE

    # Effective batch tile: large enough to fill the MXU rows and amortize the
    # ~0.35us per-grid-step overhead, but never larger than the (8-aligned)
    # batch, so tiny demo batches don't burn VMEM / compute on padding.
    # (On v7x, keep batch_tile <= B/2 at large B so the 'parallel' grid axis
    #  has >= 2 steps to shard across both TensorCores.)
    tile = min(batch_tile, _round_up(B, 8))
    tile = _round_up(tile, 8)
    b_pad = _round_up(B, tile)

    z = z.astype(jnp.bfloat16)
    if b_pad != B:
        z = jnp.pad(z, ((0, b_pad - B), (0, 0)))

    w1, b1 = params["w1"], params["b1"]
    w2, b2 = params["w2"], params["b2"]
    w3, b3 = params["w3"], params["b3"]

    grid = (b_pad // tile,)

    # Constant index_map -> block revisited every step, so Pallas only DMAs the
    # weights once and keeps them resident in VMEM for the whole grid.
    full = lambda a: pl.BlockSpec(a.shape, lambda i: (0, 0))

    out = pl.pallas_call(
        _generator_kernel,
        out_shape=jax.ShapeDtypeStruct((b_pad, IMAGE_PAD), out_dtype),
        grid_spec=pltpu.PrefetchScalarGridSpec(
            num_scalar_prefetch=0,
            grid=grid,
            in_specs=[
                pl.BlockSpec((tile, LATENT_SIZE), lambda i: (i, 0)),
                full(w1), full(b1),
                full(w2), full(b2),
                full(w3), full(b3),
            ],
            out_specs=pl.BlockSpec((tile, IMAGE_PAD), lambda i: (i, 0)),
        ),
        compiler_params=pltpu.CompilerParams(
            dimension_semantics=("parallel",),
            # Default scoped VMEM is plenty for tile=512 (~3 MB live); raise
            # vmem_limit_bytes here if sweeping much larger batch tiles.
        ),
    )(z, w1, b1, w2, b2, w3, b3)

    # Strip batch padding and the lane-dense column padding (896 -> 784).
    return out[:B, :IMAGE_SIZE]


def init_generator_params(key):
    """f32 params matching PyTorch nn.Linear default init, stored as (in, out)."""
    ks = jax.random.split(key, 6)

    def linear(kw, kb, fan_in, fan_out):
        bound = 1.0 / jnp.sqrt(jnp.float32(fan_in))
        w = jax.random.uniform(kw, (fan_in, fan_out), jnp.float32, -bound, bound)
        b = jax.random.uniform(kb, (1, fan_out), jnp.float32, -bound, bound)
        return w, b

    w1, b1 = linear(ks[0], ks[1], LATENT_SIZE, HIDDEN_SIZE)
    w2, b2 = linear(ks[2], ks[3], HIDDEN_SIZE, HIDDEN_SIZE)
    w3, b3 = linear(ks[4], ks[5], HIDDEN_SIZE, IMAGE_SIZE)
    return {"w1": w1, "b1": b1, "w2": w2, "b2": b2, "w3": w3, "b3": b3}


def prepare_params(params):
    """One-time conversion to the kernel operand layout:
       bf16 weights (MXU operands), f32 biases (added to the f32 accumulator),
       layer-3 padded 784 -> 896 columns for lane-dense stores."""
    pad = IMAGE_PAD - IMAGE_SIZE
    return {
        "w1": params["w1"].astype(jnp.bfloat16),
        "b1": params["b1"].astype(jnp.float32),
        "w2": params["w2"].astype(jnp.bfloat16),
        "b2": params["b2"].astype(jnp.float32),
        "w3": jnp.pad(params["w3"], ((0, 0), (0, pad))).astype(jnp.bfloat16),
        "b3": jnp.pad(params["b3"], ((0, 0), (0, pad))).astype(jnp.float32),
    }


def generator_reference(z, params):
    """Pure-JAX f32 reference (matches the PyTorch module semantics)."""
    h1 = jnp.maximum(z @ params["w1"] + params["b1"], 0.0)
    h2 = jnp.maximum(h1 @ params["w2"] + params["b2"], 0.0)
    return jnp.tanh(h2 @ params["w3"] + params["b3"])


def generator_reference_bf16(z, params):
    """Reference that mimics the kernel's bf16-operand / f32-accumulate path."""
    bf = lambda x: x.astype(jnp.bfloat16)
    dot = lambda a, b: jnp.dot(bf(a), bf(b), preferred_element_type=jnp.float32)
    h1 = jnp.maximum(dot(z, params["w1"]) + params["b1"], 0.0)
    h2 = jnp.maximum(dot(h1, params["w2"]) + params["b2"], 0.0)
    return jnp.tanh(dot(h2, params["w3"]) + params["b3"])


if __name__ == "__main__":
    key = jax.random.PRNGKey(0)
    k_params, k_z = jax.random.split(key)

    params_f32 = init_generator_params(k_params)
    params = prepare_params(params_f32)

    B = 20  # deliberately not 8-aligned: exercises the batch-padding path
    z = jax.random.normal(k_z, (B, LATENT_SIZE), dtype=jnp.float32)

    out = generator_forward(z, params)           # default batch_tile=512, bf16 out
    out = jax.block_until_ready(out)
    assert out.shape == (B, IMAGE_SIZE), out.shape

    out_f32 = out.astype(jnp.float32)
    ref_bf16 = generator_reference_bf16(z, params_f32)
    ref_f32 = generator_reference(z, params_f32)
    assert jnp.allclose(out_f32, ref_bf16, atol=1e-2, rtol=0.0), \
        "mismatch vs bf16-path reference"
    assert jnp.allclose(out_f32, ref_f32, atol=5e-2, rtol=0.0), \
        "mismatch vs f32 reference"

    print("KERNEL_OK")
</pallas_src>

<mosaic_0001>
module attributes {stable_mosaic.version = 11 : i64} {
  func.func @_generator_kernel(%arg0: i32, %arg1: memref<24x64xbf16, #tpu.memory_space<vmem>>, %arg2: memref<64x256xbf16, #tpu.memory_space<vmem>>, %arg3: memref<1x256xf32, #tpu.memory_space<vmem>>, %arg4: memref<256x256xbf16, #tpu.memory_space<vmem>>, %arg5: memref<1x256xf32, #tpu.memory_space<vmem>>, %arg6: memref<256x896xbf16, #tpu.memory_space<vmem>>, %arg7: memref<1x896xf32, #tpu.memory_space<vmem>>, %arg8: memref<24x896xbf16, #tpu.memory_space<vmem>>) attributes {dimension_semantics = [#tpu.dimension_semantics<parallel>], iteration_bounds = array<i64: 1>, scalar_prefetch = 0 : i64, scratch_operands = 0 : i64, tpu.core_type = #tpu.core_type<tc>, window_params = [{transform_indices = @transform_0, window_bounds = array<i64: 24, 64>}, {pipeline_mode = #tpu.pipeline_mode<synchronous>, transform_indices = @transform_1, window_bounds = array<i64: 64, 256>}, {pipeline_mode = #tpu.pipeline_mode<synchronous>, transform_indices = @transform_2, window_bounds = array<i64: 1, 256>}, {pipeline_mode = #tpu.pipeline_mode<synchronous>, transform_indices = @transform_3, window_bounds = array<i64: 256, 256>}, {pipeline_mode = #tpu.pipeline_mode<synchronous>, transform_indices = @transform_4, window_bounds = array<i64: 1, 256>}, {pipeline_mode = #tpu.pipeline_mode<synchronous>, transform_indices = @transform_5, window_bounds = array<i64: 256, 896>}, {pipeline_mode = #tpu.pipeline_mode<synchronous>, transform_indices = @transform_6, window_bounds = array<i64: 1, 896>}, {transform_indices = @transform_7, window_bounds = array<i64: 24, 896>}]} {
    %c0 = arith.constant 0 : index
    %c0_0 = arith.constant 0 : index
    %0 = vector.load %arg1[%c0, %c0_0] : memref<24x64xbf16, #tpu.memory_space<vmem>>, vector<24x64xbf16>
    %c0_1 = arith.constant 0 : index
    %c0_2 = arith.constant 0 : index
    %1 = vector.load %arg2[%c0_1, %c0_2] : memref<64x256xbf16, #tpu.memory_space<vmem>>, vector<64x256xbf16>
    %cst = arith.constant dense<0.000000e+00> : vector<24x256xf32>
    %2 = tpu.matmul %0, %1, %cst {dimension_numbers = #tpu.dot_dimension_numbers<[1], [0], [0], [1], [0, 0, 1, 1], [], []>} : vector<24x64xbf16>, vector<64x256xbf16>, vector<24x256xf32> -> vector<24x256xf32>
    %c0_3 = arith.constant 0 : index
    %c0_4 = arith.constant 0 : index
    %3 = vector.load %arg3[%c0_3, %c0_4] : memref<1x256xf32, #tpu.memory_space<vmem>>, vector<1x256xf32>
    %4 = vector.broadcast %3 : vector<1x256xf32> to vector<24x256xf32>
    %5 = arith.addf %2, %4 : vector<24x256xf32>
    %cst_5 = arith.constant 0.000000e+00 : f32
    %6 = vector.broadcast %cst_5 : f32 to vector<24x256xf32>
    %7 = arith.maximumf %5, %6 : vector<24x256xf32>
    %8 = arith.truncf %7 : vector<24x256xf32> to vector<24x256xbf16>
    %c0_6 = arith.constant 0 : index
    %c0_7 = arith.constant 0 : index
    %9 = vector.load %arg4[%c0_6, %c0_7] : memref<256x256xbf16, #tpu.memory_space<vmem>>, vector<256x256xbf16>
    %cst_8 = arith.constant dense<0.000000e+00> : vector<24x256xf32>
    %10 = tpu.matmul %8, %9, %cst_8 {dimension_numbers = #tpu.dot_dimension_numbers<[1], [0], [0], [1], [0, 0, 1, 1], [], []>} : vector<24x256xbf16>, vector<256x256xbf16>, vector<24x256xf32> -> vector<24x256xf32>
    %c0_9 = arith.constant 0 : index
    %c0_10 = arith.constant 0 : index
    %11 = vector.load %arg5[%c0_9, %c0_10] : memref<1x256xf32, #tpu.memory_space<vmem>>, vector<1x256xf32>
    %12 = vector.broadcast %11 : vector<1x256xf32> to vector<24x256xf32>
    %13 = arith.addf %10, %12 : vector<24x256xf32>
    %cst_11 = arith.constant 0.000000e+00 : f32
    %14 = vector.broadcast %cst_11 : f32 to vector<24x256xf32>
    %15 = arith.maximumf %13, %14 : vector<24x256xf32>
    %16 = arith.truncf %15 : vector<24x256xf32> to vector<24x256xbf16>
    %c0_12 = arith.constant 0 : index
    %c0_13 = arith.constant 0 : index
    %17 = vector.load %arg6[%c0_12, %c0_13] : memref<256x896xbf16, #tpu.memory_space<vmem>>, vector<256x896xbf16>
    %cst_14 = arith.constant dense<0.000000e+00> : vector<24x896xf32>
    %18 = tpu.matmul %16, %17, %cst_14 {dimension_numbers = #tpu.dot_dimension_numbers<[1], [0], [0], [1], [0, 0, 1, 1], [], []>} : vector<24x256xbf16>, vector<256x896xbf16>, vector<24x896xf32> -> vector<24x896xf32>
    %c0_15 = arith.constant 0 : index
    %c0_16 = arith.constant 0 : index
    %19 = vector.load %arg7[%c0_15, %c0_16] : memref<1x896xf32, #tpu.memory_space<vmem>>, vector<1x896xf32>
    %20 = vector.broadcast %19 : vector<1x896xf32> to vector<24x896xf32>
    %21 = arith.addf %18, %20 : vector<24x896xf32>
    %22 = math.tanh %21 : vector<24x896xf32>
    %23 = arith.truncf %22 : vector<24x896xf32> to vector<24x896xbf16>
    %c0_17 = arith.constant 0 : index
    %c0_18 = arith.constant 0 : index
    %24 = vector.load %arg8[%c0_17, %c0_18] : memref<24x896xbf16, #tpu.memory_space<vmem>>, vector<24x896xbf16>
    tpu.vector_store %arg8[%c0_17, %c0_18], %23 {strides = array<i32>} : memref<24x896xbf16, #tpu.memory_space<vmem>>, vector<24x896xbf16>,
    return
  }
  func.func @transform_0(%arg0: i32) -> (i32, i32) {
    %c0_i32 = arith.constant 0 : i32
    %c0_i32_0 = arith.constant 0 : i32
    return %arg0, %c0_i32 : i32, i32
  }
  func.func @transform_1(%arg0: i32) -> (i32, i32) {
    %c0_i32 = arith.constant 0 : i32
    %c0_i32_0 = arith.constant 0 : i32
    %c0_i32_1 = arith.constant 0 : i32
    return %c0_i32, %c0_i32_0 : i32, i32
  }
  func.func @transform_2(%arg0: i32) -> (i32, i32) {
    %c0_i32 = arith.constant 0 : i32
    %c0_i32_0 = arith.constant 0 : i32
    %c0_i32_1 = arith.constant 0 : i32
    return %c0_i32, %c0_i32_0 : i32, i32
  }
  func.func @transform_3(%arg0: i32) -> (i32, i32) {
    %c0_i32 = arith.constant 0 : i32
    %c0_i32_0 = arith.constant 0 : i32
    %c0_i32_1 = arith.constant 0 : i32
    return %c0_i32, %c0_i32_0 : i32, i32
  }
  func.func @transform_4(%arg0: i32) -> (i32, i32) {
    %c0_i32 = arith.constant 0 : i32
    %c0_i32_0 = arith.constant 0 : i32
    %c0_i32_1 = arith.constant 0 : i32
    return %c0_i32, %c0_i32_0 : i32, i32
  }
  func.func @transform_5(%arg0: i32) -> (i32, i32) {
    %c0_i32 = arith.constant 0 : i32
    %c0_i32_0 = arith.constant 0 : i32
    %c0_i32_1 = arith.constant 0 : i32
    return %c0_i32, %c0_i32_0 : i32, i32
  }
  func.func @transform_6(%arg0: i32) -> (i32, i32) {
    %c0_i32 = arith.constant 0 : i32
    %c0_i32_0 = arith.constant 0 : i32
    %c0_i32_1 = arith.constant 0 : i32
    return %c0_i32, %c0_i32_0 : i32, i32
  }
  func.func @transform_7(%arg0: i32) -> (i32, i32) {
    %c0_i32 = arith.constant 0 : i32
    %c0_i32_0 = arith.constant 0 : i32
    return %arg0, %c0_i32 : i32, i32
  }
}

</mosaic_0001>

<llo_original>
// kernel: generator_forward.1
$region0: #{generator_forward.1}
  #allocation0 [shape = 'u32[]', space=smem, size = 0x4, offset = 0x4, fixed_abs, tag = 'smem constant byte address 0x4 - core index']
  #allocation1 [shape = 'u32[144,128]{1,0:T(1,128)}', space=vmem, size = 0x12000, scoped, tag = 'internal scratch']
  %s0 = inlined_call_operand.vmem [shape: bf16[24,64], index: 0, kind: input, shape index: {}]
  %s1 = inlined_call_operand.vmem [shape: bf16[64,256], index: 1, kind: input, shape index: {}]
  %s2 = inlined_call_operand.vmem [shape: f32[1,256], index: 2, kind: input, shape index: {}]
  %s3 = inlined_call_operand.hbm [shape: bf16[256,256], index: 3, kind: input, shape index: {}]
  %s4 = inlined_call_operand.vmem [shape: f32[1,256], index: 4, kind: input, shape index: {}]
  %s5 = inlined_call_operand.hbm [shape: bf16[256,896], index: 5, kind: input, shape index: {}]
  %s6 = inlined_call_operand.vmem [shape: f32[1,896], index: 6, kind: input, shape index: {}]
  %s7 = inlined_call_operand.hbm [shape: bf16[24,896], index: 7, kind: output, shape index: {}]
  %s8 = sld [smem:[#allocation0]]
  $region46: #{generator_forward.1} parent=0
    _
  %s10 = ssub.s32 1, %s8
  %s11 = scalar_select 0, %s10, %s8
  $region1: #{generator_forward.1} parent=0
    #allocation2 [shape = 'u8[131072]{0}', space=vmem, size = 0x20000, scoped, tag = 'input window, operand 3, single buffered']
    #allocation3 [shape = 's32[1]{0}', space=sflag, size = 0x4, scoped, tag = 'scoped memory for generator_forward.1']
    #allocation4 [shape = 's32[1]{0}', space=sflag, size = 0x4, scoped, tag = 'scoped memory for generator_forward.1']
    #allocation5 [shape = 'u8[458752]{0}', space=vmem, size = 0x70000, scoped, tag = 'input window, operand 5, single buffered']
    #allocation6 [shape = 's32[1]{0}', space=sflag, size = 0x4, scoped, tag = 'scoped memory for generator_forward.1']
    #allocation7 [shape = 'u8[43008]{0}', space=vmem, size = 0xa800, scoped, tag = 'output window, operand 0, single buffered']
    %12 = vsyncpa [#allocation3], 0
    %13 = vsyncpa [#allocation6], 0
    %14 = vsyncpa [#allocation4], 0
    // Predicated region
    $region2: #{generator_forward.1} parent=1 // pred_check
      _
    $region3: #{generator_forward.1} parent=1 // pred_check_branch
      %16 = sbr.rel (0) target = $region5
    $region4: #{generator_forward.1} parent=1 // pred_region
      _
    $region5: #{generator_forward.1} parent=1 // pred_fallthru
      _
    // Predicated region
    $region6: #{generator_forward.1} parent=1 // pred_check
      _
    $region7: #{generator_forward.1} parent=1 // pred_check_branch
      %18 = sbr.rel (0) target = $region9
    $region8: #{generator_forward.1} parent=1 // pred_region
      _
    $region9: #{generator_forward.1} parent=1 // pred_fallthru
      _
    // Predicated region
    $region10: #{generator_forward.1} parent=1 // pred_check
      _
    $region11: #{generator_forward.1} parent=1 // pred_check_branch
      %20 = sbr.rel (0) target = $region13
    $region12: #{generator_forward.1} parent=1 // pred_region
      _
    $region13: #{generator_forward.1} parent=1 // pred_fallthru
      _
    // Predicated region
    $region14: #{generator_forward.1} parent=1 // pred_check
      _
    $region15: #{generator_forward.1} parent=1 // pred_check_branch
      %22 = sbr.rel (0) target = $region17
    $region16: #{generator_forward.1} parent=1 // pred_region
      %s24 = ssub.s32 4096, 4096
      %25 = vsyncadd [#allocation3], %s24
      %s26 = sshll.u32 [#allocation2], 4
      %s27 = int_to_ptr.vmem [resolvable:$true] %s26
      %32 = dma.hbm_to_vmem [thread:$0]  %s3, 4096, %s27, [#allocation3], 128, 128, 8
    $region17: #{generator_forward.1} parent=1 // pred_fallthru
      _
    // Predicated region
    $region18: #{generator_forward.1} parent=1 // pred_check
      _
    $region19: #{generator_forward.1} parent=1 // pred_check_branch
      %34 = sbr.rel (0) target = $region21
    $region20: #{generator_forward.1} parent=1 // pred_region
      _
    $region21: #{generator_forward.1} parent=1 // pred_fallthru
      _
    // Predicated region
    $region22: #{generator_forward.1} parent=1 // pred_check
      _
    $region23: #{generator_forward.1} parent=1 // pred_check_branch
      %36 = sbr.rel (0) target = $region25
    $region24: #{generator_forward.1} parent=1 // pred_region
      %s38 = ssub.s32 14336, 14336
      %39 = vsyncadd [#allocation6], %s38
      %s40 = sshll.u32 [#allocation5], 4
      %s41 = int_to_ptr.vmem [resolvable:$true] %s40
      %46 = dma.hbm_to_vmem [thread:$0]  %s5, 14336, %s41, [#allocation6], 448, 448, 28
    $region25: #{generator_forward.1} parent=1 // pred_fallthru
      _
    // Predicated region
    $region26: #{generator_forward.1} parent=1 // pred_check
      _
    $region27: #{generator_forward.1} parent=1 // pred_check_branch
      %48 = sbr.rel (0) target = $region29
    $region28: #{generator_forward.1} parent=1 // pred_region
      _
    $region29: #{generator_forward.1} parent=1 // pred_fallthru
      _
    // Predicated region
    $region30: #{generator_forward.1} parent=1 // pred_check
      _
    $region31: #{generator_forward.1} parent=1 // pred_check_branch
      %50 = sbr.rel (0) target = $region33
    $region32: #{generator_forward.1} parent=1 // pred_region
      %51 = dma.done [#allocation3], 4096
    $region33: #{generator_forward.1} parent=1 // pred_fallthru
      _
    // Predicated region
    $region34: #{generator_forward.1} parent=1 // pred_check
      _
    $region35: #{generator_forward.1} parent=1 // pred_check_branch
      %53 = sbr.rel (0) target = $region37
    $region36: #{generator_forward.1} parent=1 // pred_region
      %54 = dma.done [#allocation6], 14336
    $region37: #{generator_forward.1} parent=1 // pred_fallthru
      _
    %v56 = vld [vmem:[%s0] sm:$0xf]
    %v57 = vld [vmem:[%s0 + $0x4] sm:$0xf]
    %v58 = vld [vmem:[%s0 + $0x8] sm:$0xf]
    %v59 = vld [vmem:[%s1] sm:$0xff]
    %v60 = vld [vmem:[%s1 + $0x8] sm:$0xff]
    %v61 = vld [vmem:[%s1 + $0x10] sm:$0xff]
    %v62 = vld [vmem:[%s1 + $0x18] sm:$0xff]
    %v63 = vld [vmem:[%s1 + $0x20] sm:$0xff]
    %v64 = vld [vmem:[%s1 + $0x28] sm:$0xff]
    %v65 = vld [vmem:[%s1 + $0x30] sm:$0xff]
    %v66 = vld [vmem:[%s1 + $0x38] sm:$0xff]
    %v67 = vld [vmem:[%s2] sm:$0x3]
    %v69 = vlaneseq
    %v70 = vshrl.u32 %v69, 7
    %v71 = vsub.s32 0, %v70
    %v72 = vrot.slane %v67, %v71
    %v73 = vlaneseq
    %v74 = vshrl.u32 %v73, 7
    %v75 = vsub.s32 1, %v74
    %v76 = vrot.slane %v67, %v75
    %v82 = vunpack.c.l.b16 %v56
    %v83 = vunpack.c.l.b16 %v57
    %v84 = vunpack.c.l.b16 %v58
    %v85 = vpack.c.b16 %v83, %v82
    %v86 = vpack.c.b16 %v84, %v84
    %v95 = vunpack.c.l.b16 %v59
    %v96 = vunpack.c.h.b16 %v59
    %v97 = vunpack.c.l.b16 %v60
    %v98 = vunpack.c.h.b16 %v60
    %v99 = vunpack.c.l.b16 %v61
    %v100 = vunpack.c.h.b16 %v61
    %v101 = vunpack.c.l.b16 %v62
    %v102 = vunpack.c.h.b16 %v62
    %v103 = vunpack.c.l.b16 %v63
    %v104 = vunpack.c.h.b16 %v63
    %v105 = vunpack.c.l.b16 %v64
    %v106 = vunpack.c.h.b16 %v64
    %v107 = vunpack.c.l.b16 %v65
    %v108 = vunpack.c.h.b16 %v65
    %v109 = vunpack.c.l.b16 %v66
    %v110 = vunpack.c.h.b16 %v66
    %v111 = vpack.c.b16 %v97, %v95
    %v112 = vpack.c.b16 %v98, %v96
    %v113 = vpack.c.b16 %v101, %v99
    %v114 = vpack.c.b16 %v102, %v100
    %v115 = vpack.c.b16 %v105, %v103
    %v116 = vpack.c.b16 %v106, %v104
    %v117 = vpack.c.b16 %v109, %v107
    %v118 = vpack.c.b16 %v110, %v108
    %vm127 = vcmask 523264
    %v129 = vsel %vm127, %v85, 0
    %v132 = vsel %vm127, %v86, 0
    %134 = vmatprep.subr.bf16.mxu0 %v112
    %135 = vmatpush1.bf16.msra.mxu0 %v111
    %136 = vmatprep.subr.bf16.mxu0 %v114
    %137 = vmatpush1.bf16.msra.mxu0 %v113
    %138 = vmatprep.subr.bf16.mxu0 %v116
    %139 = vmatpush1.bf16.msra.mxu0 %v115
    %140 = vmatprep.subr.bf16.mxu0 %v118
    %141 = vmatpush1.bf16.msra.mxu0 %v117
    %142 = vmatprep.subr.bf16.mxu0 0
    %143 = vmatpush1.bf16.msra.mxu0 0
    %144 = vmatprep.subr.bf16.mxu0 0
    %145 = vmatpush1.bf16.msra.mxu0 0
    %146 = vmatprep.subr.bf16.mxu0 0
    %147 = vmatpush1.bf16.msra.mxu0 0
    %148 = vmatprep.subr.bf16.mxu0 0
    %149 = vmatpush1.bf16.msra.mxu0 0
    %150 = vmatprep.subr.bf16.mxu0 0
    %151 = vmatpush1.bf16.msra.mxu0 0
    %152 = vmatprep.subr.bf16.mxu0 0
    %153 = vmatpush1.bf16.msra.mxu0 0
    %154 = vmatprep.subr.bf16.mxu0 0
    %155 = vmatpush1.bf16.msra.mxu0 0
    %156 = vmatprep.subr.bf16.mxu0 0
    %157 = vmatpush1.bf16.msra.mxu0 0
    %158 = vmatprep.subr.bf16.mxu0 0
    %159 = vmatpush1.bf16.msra.mxu0 0
    %160 = vmatprep.subr.bf16.mxu0 0
    %161 = vmatpush1.bf16.msra.mxu0 0
    %162 = vmatprep.subr.bf16.mxu0 0
    %163 = vmatpush1.bf16.msra.mxu0 0
    %164 = vmatprep.subr.bf16.mxu0 0
    %165 = vmatpush1.bf16.msra.mxu0 0
    %166 = vmatprep.mubr.bf16.mxu0 0
    %167 = vmatmul.mubr.bf16.gmra.mrb[0].mxu0 %v129
    %v168 = vpop.f32.mrb[0].mxu0
    %v169 = vadd.f32 %v72, %v168
    %v170 = vpop.f32.mrb[0].mxu0
    %v171 = vadd.f32 %v76, %v170
    %v172 = vpop.f32.mrb[0].mxu0
    %v173 = vadd.f32 %v72, %v172
    %v174 = vpop.f32.mrb[0].mxu0
    %v175 = vadd.f32 %v76, %v174
    %176 = vmatprep.mubr.bf16.mxu0 0
    %177 = vmatmul.mubr.bf16.gmra.mrb[0].mxu0 %v132
    %v178 = vpop.f32.mrb[0].mxu0
    %v179 = vadd.f32 %v72, %v178
    %v180 = vpop.f32.mrb[0].mxu0
    %v181 = vadd.f32 %v76, %v180
    %v182 = vpop.f32.mrb[0].mxu0
    %v183 = vpop.f32.mrb[0].mxu0
    %184 = vdwg.mxu0
    %v185 = vmax.f32 %v169, 0.0
    %v186 = vmax.f32 %v171, 0.0
    %v187 = vmax.f32 %v173, 0.0
    %v188 = vmax.f32 %v175, 0.0
    %v189 = vmax.f32 %v179, 0.0
    %v190 = vmax.f32 %v181, 0.0
    %v191 = vpack.c.bf16 %v187, %v185
    %v192 = vpack.c.bf16 %v188, %v186
    %v193 = vpack.c.bf16 %v189, %v189
    %v194 = vpack.c.bf16 %v190, %v190
    %v195 = vld [vmem:[#allocation2] sm:$0xff]
    %v196 = vld [vmem:[#allocation2 + $0x8] sm:$0xff]
    %v197 = vld [vmem:[#allocation2 + $0x10] sm:$0xff]
    %v198 = vld [vmem:[#allocation2 + $0x18] sm:$0xff]
    %v199 = vld [vmem:[#allocation2 + $0x20] sm:$0xff]
    %v200 = vld [vmem:[#allocation2 + $0x28] sm:$0xff]
    %v201 = vld [vmem:[#allocation2 + $0x30] sm:$0xff]
    %v202 = vld [vmem:[#allocation2 + $0x38] sm:$0xff]
    %v203 = vld [vmem:[#allocation2 + $0x40] sm:$0xff]
    %v204 = vld [vmem:[#allocation2 + $0x48] sm:$0xff]
    %v205 = vld [vmem:[#allocation2 + $0x50] sm:$0xff]
    %v206 = vld [vmem:[#allocation2 + $0x58] sm:$0xff]
    %v207 = vld [vmem:[#allocation2 + $0x60] sm:$0xff]
    %v208 = vld [vmem:[#allocation2 + $0x68] sm:$0xff]
    %v209 = vld [vmem:[#allocation2 + $0x70] sm:$0xff]
    %v210 = vld [vmem:[#allocation2 + $0x78] sm:$0xff]
    %v211 = vld [vmem:[#allocation2 + $0x80] sm:$0xff]
    %v212 = vld [vmem:[#allocation2 + $0x88] sm:$0xff]
    %v213 = vld [vmem:[#allocation2 + $0x90] sm:$0xff]
    %v214 = vld [vmem:[#allocation2 + $0x98] sm:$0xff]
    %v215 = vld [vmem:[#allocation2 + $0xa0] sm:$0xff]
    %v216 = vld [vmem:[#allocation2 + $0xa8] sm:$0xff]
    %v217 = vld [vmem:[#allocation2 + $0xb0] sm:$0xff]
    %v218 = vld [vmem:[#allocation2 + $0xb8] sm:$0xff]
    %v219 = vld [vmem:[#allocation2 + $0xc0] sm:$0xff]
    %v220 = vld [vmem:[#allocation2 + $0xc8] sm:$0xff]
    %v221 = vld [vmem:[#allocation2 + $0xd0] sm:$0xff]
    %v222 = vld [vmem:[#allocation2 + $0xd8] sm:$0xff]
    %v223 = vld [vmem:[#allocation2 + $0xe0] sm:$0xff]
    %v224 = vld [vmem:[#allocation2 + $0xe8] sm:$0xff]
    %v225 = vld [vmem:[#allocation2 + $0xf0] sm:$0xff]
    %v226 = vld [vmem:[#allocation2 + $0xf8] sm:$0xff]
    %v227 = vld [vmem:[%s4] sm:$0x3]
    %v229 = vlaneseq
    %v230 = vshrl.u32 %v229, 7
    %v231 = vsub.s32 0, %v230
    %v232 = vrot.slane %v227, %v231
    %v233 = vlaneseq
    %v234 = vshrl.u32 %v233, 7
    %v235 = vsub.s32 1, %v234
    %v236 = vrot.slane %v227, %v235
    %v271 = vunpack.c.l.b16 %v195
    %v272 = vunpack.c.h.b16 %v195
    %v273 = vunpack.c.l.b16 %v196
    %v274 = vunpack.c.h.b16 %v196
    %v275 = vunpack.c.l.b16 %v197
    %v276 = vunpack.c.h.b16 %v197
    %v277 = vunpack.c.l.b16 %v198
    %v278 = vunpack.c.h.b16 %v198
    %v279 = vunpack.c.l.b16 %v199
    %v280 = vunpack.c.h.b16 %v199
    %v281 = vunpack.c.l.b16 %v200
    %v282 = vunpack.c.h.b16 %v200
    %v283 = vunpack.c.l.b16 %v201
    %v284 = vunpack.c.h.b16 %v201
    %v285 = vunpack.c.l.b16 %v202
    %v286 = vunpack.c.h.b16 %v202
    %v287 = vunpack.c.l.b16 %v203
    %v288 = vunpack.c.h.b16 %v203
    %v289 = vunpack.c.l.b16 %v204
    %v290 = vunpack.c.h.b16 %v204
    %v291 = vunpack.c.l.b16 %v205
    %v292 = vunpack.c.h.b16 %v205
    %v293 = vunpack.c.l.b16 %v206
    %v294 = vunpack.c.h.b16 %v206
    %v295 = vunpack.c.l.b16 %v207
    %v296 = vunpack.c.h.b16 %v207
    %v297 = vunpack.c.l.b16 %v208
    %v298 = vunpack.c.h.b16 %v208
    %v299 = vunpack.c.l.b16 %v209
    %v300 = vunpack.c.h.b16 %v209
    %v301 = vunpack.c.l.b16 %v210
    %v302 = vunpack.c.h.b16 %v210
    %v303 = vunpack.c.l.b16 %v211
    %v304 = vunpack.c.h.b16 %v211
    %v305 = vunpack.c.l.b16 %v212
    %v306 = vunpack.c.h.b16 %v212
    %v307 = vunpack.c.l.b16 %v213
    %v308 = vunpack.c.h.b16 %v213
    %v309 = vunpack.c.l.b16 %v214
    %v310 = vunpack.c.h.b16 %v214
    %v311 = vunpack.c.l.b16 %v215
    %v312 = vunpack.c.h.b16 %v215
    %v313 = vunpack.c.l.b16 %v216
    %v314 = vunpack.c.h.b16 %v216
    %v315 = vunpack.c.l.b16 %v217
    %v316 = vunpack.c.h.b16 %v217
    %v317 = vunpack.c.l.b16 %v218
    %v318 = vunpack.c.h.b16 %v218
    %v319 = vunpack.c.l.b16 %v219
    %v320 = vunpack.c.h.b16 %v219
    %v321 = vunpack.c.l.b16 %v220
    %v322 = vunpack.c.h.b16 %v220
    %v323 = vunpack.c.l.b16 %v221
    %v324 = vunpack.c.h.b16 %v221
    %v325 = vunpack.c.l.b16 %v222
    %v326 = vunpack.c.h.b16 %v222
    %v327 = vunpack.c.l.b16 %v223
    %v328 = vunpack.c.h.b16 %v223
    %v329 = vunpack.c.l.b16 %v224
    %v330 = vunpack.c.h.b16 %v224
    %v331 = vunpack.c.l.b16 %v225
    %v332 = vunpack.c.h.b16 %v225
    %v333 = vunpack.c.l.b16 %v226
    %v334 = vunpack.c.h.b16 %v226
    %v335 = vpack.c.b16 %v273, %v271
    %v336 = vpack.c.b16 %v274, %v272
    %v337 = vpack.c.b16 %v277, %v275
    %v338 = vpack.c.b16 %v278, %v276
    %v339 = vpack.c.b16 %v281, %v279
    %v340 = vpack.c.b16 %v282, %v280
    %v341 = vpack.c.b16 %v285, %v283
    %v342 = vpack.c.b16 %v286, %v284
    %v343 = vpack.c.b16 %v289, %v287
    %v344 = vpack.c.b16 %v290, %v288
    %v345 = vpack.c.b16 %v293, %v291
    %v346 = vpack.c.b16 %v294, %v292
    %v347 = vpack.c.b16 %v297, %v295
    %v348 = vpack.c.b16 %v298, %v296
    %v349 = vpack.c.b16 %v301, %v299
    %v350 = vpack.c.b16 %v302, %v300
    %v351 = vpack.c.b16 %v305, %v303
    %v352 = vpack.c.b16 %v306, %v304
    %v353 = vpack.c.b16 %v309, %v307
    %v354 = vpack.c.b16 %v310, %v308
    %v355 = vpack.c.b16 %v313, %v311
    %v356 = vpack.c.b16 %v314, %v312
    %v357 = vpack.c.b16 %v317, %v315
    %v358 = vpack.c.b16 %v318, %v316
    %v359 = vpack.c.b16 %v321, %v319
    %v360 = vpack.c.b16 %v322, %v320
    %v361 = vpack.c.b16 %v325, %v323
    %v362 = vpack.c.b16 %v326, %v324
    %v363 = vpack.c.b16 %v329, %v327
    %v364 = vpack.c.b16 %v330, %v328
    %v365 = vpack.c.b16 %v333, %v331
    %v366 = vpack.c.b16 %v334, %v332
    %399 = vmatprep.subr.bf16.mxu0 %v336
    %400 = vmatpush1.bf16.msra.mxu0 %v335
    %401 = vmatprep.subr.bf16.mxu0 %v338
    %402 = vmatpush1.bf16.msra.mxu0 %v337
    %403 = vmatprep.subr.bf16.mxu0 %v340
    %404 = vmatpush1.bf16.msra.mxu0 %v339
    %405 = vmatprep.subr.bf16.mxu0 %v342
    %406 = vmatpush1.bf16.msra.mxu0 %v341
    %407 = vmatprep.subr.bf16.mxu0 %v344
    %408 = vmatpush1.bf16.msra.mxu0 %v343
    %409 = vmatprep.subr.bf16.mxu0 %v346
    %410 = vmatpush1.bf16.msra.mxu0 %v345
    %411 = vmatprep.subr.bf16.mxu0 %v348
    %412 = vmatpush1.bf16.msra.mxu0 %v347
    %413 = vmatprep.subr.bf16.mxu0 %v350
    %414 = vmatpush1.bf16.msra.mxu0 %v349
    %415 = vmatprep.subr.bf16.mxu0 %v352
    %416 = vmatpush1.bf16.msra.mxu0 %v351
    %417 = vmatprep.subr.bf16.mxu0 %v354
    %418 = vmatpush1.bf16.msra.mxu0 %v353
    %419 = vmatprep.subr.bf16.mxu0 %v356
    %420 = vmatpush1.bf16.msra.mxu0 %v355
    %421 = vmatprep.subr.bf16.mxu0 %v358
    %422 = vmatpush1.bf16.msra.mxu0 %v357
    %423 = vmatprep.subr.bf16.mxu0 %v360
    %424 = vmatpush1.bf16.msra.mxu0 %v359
    %425 = vmatprep.subr.bf16.mxu0 %v362
    %426 = vmatpush1.bf16.msra.mxu0 %v361
    %427 = vmatprep.subr.bf16.mxu0 %v364
    %428 = vmatpush1.bf16.msra.mxu0 %v363
    %429 = vmatprep.subr.bf16.mxu0 %v366
    %430 = vmatpush1.bf16.msra.mxu0 %v365
    %431 = vmatprep.mubr.bf16.mxu0 %v192
    %432 = vmatmul.mubr.bf16.gmra.mrb[0].mxu0 %v191
    %v433 = vpop.f32.mrb[0].mxu0
    %v434 = vadd.f32 %v232, %v433
    %v435 = vpop.f32.mrb[0].mxu0
    %v436 = vadd.f32 %v236, %v435
    %v437 = vpop.f32.mrb[0].mxu0
    %v438 = vadd.f32 %v232, %v437
    %v439 = vpop.f32.mrb[0].mxu0
    %v440 = vadd.f32 %v236, %v439
    %441 = vmatprep.mubr.bf16.mxu0 %v194
    %442 = vmatmul.mubr.bf16.gmra.mrb[0].mxu0 %v193
    %v443 = vpop.f32.mrb[0].mxu0
    %v444 = vadd.f32 %v232, %v443
    %v445 = vpop.f32.mrb[0].mxu0
    %v446 = vadd.f32 %v236, %v445
    %v447 = vpop.f32.mrb[0].mxu0
    %v448 = vpop.f32.mrb[0].mxu0
    %449 = vdwg.mxu0
    %v450 = vmax.f32 %v434, 0.0
    %v451 = vmax.f32 %v436, 0.0
    %v452 = vmax.f32 %v438, 0.0
    %v453 = vmax.f32 %v440, 0.0
    %v454 = vmax.f32 %v444, 0.0
    %v455 = vmax.f32 %v446, 0.0
    %v456 = vpack.c.bf16 %v452, %v450
    %v457 = vpack.c.bf16 %v453, %v451
    %v458 = vpack.c.bf16 %v454, %v454
    %v459 = vpack.c.bf16 %v455, %v455
    %v460 = vld [vmem:[#allocation5] sm:$0xff]
    %v461 = vld [vmem:[#allocation5 + $0x8] sm:$0xff]
    %v462 = vld [vmem:[#allocation5 + $0x10] sm:$0xff]
    %v463 = vld [vmem:[#allocation5 + $0x18] sm:$0xf]
    %v464 = vld [vmem:[#allocation5 + $0x1c] sm:$0xff]
    %v465 = vld [vmem:[#allocation5 + $0x24] sm:$0xff]
    %v466 = vld [vmem:[#allocation5 + $0x2c] sm:$0xff]
    %v467 = vld [vmem:[#allocation5 + $0x34] sm:$0xf]
    %v468 = vld [vmem:[#allocation5 + $0x38] sm:$0xff]
    %v469 = vld [vmem:[#allocation5 + $0x40] sm:$0xff]
    %v470 = vld [vmem:[#allocation5 + $0x48] sm:$0xff]
    %v471 = vld [vmem:[#allocation5 + $0x50] sm:$0xf]
    %v472 = vld [vmem:[#allocation5 + $0x54] sm:$0xff]
    %v473 = vld [vmem:[#allocation5 + $0x5c] sm:$0xff]
    %v474 = vld [vmem:[#allocation5 + $0x64] sm:$0xff]
    %v475 = vld [vmem:[#allocation5 + $0x6c] sm:$0xf]
    %v476 = vld [vmem:[#allocation5 + $0x70] sm:$0xff]
    %v477 = vld [vmem:[#allocation5 + $0x78] sm:$0xff]
    %v478 = vld [vmem:[#allocation5 + $0x80] sm:$0xff]
    %v479 = vld [vmem:[#allocation5 + $0x88] sm:$0xf]
    %v480 = vld [vmem:[#allocation5 + $0x8c] sm:$0xff]
    %v481 = vld [vmem:[#allocation5 + $0x94] sm:$0xff]
    %v482 = vld [vmem:[#allocation5 + $0x9c] sm:$0xff]
    %v483 = vld [vmem:[#allocation5 + $0xa4] sm:$0xf]
    %v484 = vld [vmem:[#allocation5 + $0xa8] sm:$0xff]
    %v485 = vld [vmem:[#allocation5 + $0xb0] sm:$0xff]
    %v486 = vld [vmem:[#allocation5 + $0xb8] sm:$0xff]
    %v487 = vld [vmem:[#allocation5 + $0xc0] sm:$0xf]
    %v488 = vld [vmem:[#allocation5 + $0xc4] sm:$0xff]
    %v489 = vld [vmem:[#allocation5 + $0xcc] sm:$0xff]
    %v490 = vld [vmem:[#allocation5 + $0xd4] sm:$0xff]
    %v491 = vld [vmem:[#allocation5 + $0xdc] sm:$0xf]
    %v492 = vld [vmem:[#allocation5 + $0xe0] sm:$0xff]
    %v493 = vld [vmem:[#allocation5 + $0xe8] sm:$0xff]
    %v494 = vld [vmem:[#allocation5 + $0xf0] sm:$0xff]
    %v495 = vld [vmem:[#allocation5 + $0xf8] sm:$0xf]
    %v496 = vld [vmem:[#allocation5 + $0xfc] sm:$0xff]
    %v497 = vld [vmem:[#allocation5 + $0x104] sm:$0xff]
    %v498 = vld [vmem:[#allocation5 + $0x10c] sm:$0xff]
    %v499 = vld [vmem:[#allocation5 + $0x114] sm:$0xf]
    %v500 = vld [vmem:[#allocation5 + $0x118] sm:$0xff]
    %v501 = vld [vmem:[#allocation5 + $0x120] sm:$0xff]
    %v502 = vld [vmem:[#allocation5 + $0x128] sm:$0xff]
    %v503 = vld [vmem:[#allocation5 + $0x130] sm:$0xf]
    %v504 = vld [vmem:[#allocation5 + $0x134] sm:$0xff]
    %v505 = vld [vmem:[#allocation5 + $0x13c] sm:$0xff]
    %v506 = vld [vmem:[#allocation5 + $0x144] sm:$0xff]
    %v507 = vld [vmem:[#allocation5 + $0x14c] sm:$0xf]
    %v508 = vld [vmem:[#allocation5 + $0x150] sm:$0xff]
    %v509 = vld [vmem:[#allocation5 + $0x158] sm:$0xff]
    %v510 = vld [vmem:[#allocation5 + $0x160] sm:$0xff]
    %v511 = vld [vmem:[#allocation5 + $0x168] sm:$0xf]
    %v512 = vld [vmem:[#allocation5 + $0x16c] sm:$0xff]
    %v513 = vld [vmem:[#allocation5 + $0x174] sm:$0xff]
    %v514 = vld [vmem:[#allocation5 + $0x17c] sm:$0xff]
    %v515 = vld [vmem:[#allocation5 + $0x184] sm:$0xf]
    %v516 = vld [vmem:[#allocation5 + $0x188] sm:$0xff]
    %v517 = vld [vmem:[#allocation5 + $0x190] sm:$0xff]
    %v518 = vld [vmem:[#allocation5 + $0x198] sm:$0xff]
    %v519 = vld [vmem:[#allocation5 + $0x1a0] sm:$0xf]
    %v520 = vld [vmem:[#allocation5 + $0x1a4] sm:$0xff]
    %v521 = vld [vmem:[#allocation5 + $0x1ac] sm:$0xff]
    %v522 = vld [vmem:[#allocation5 + $0x1b4] sm:$0xff]
    %v523 = vld [vmem:[#allocation5 + $0x1bc] sm:$0xf]
    %v524 = vld [vmem:[#allocation5 + $0x1c0] sm:$0xff]
    %v525 = vld [vmem:[#allocation5 + $0x1c8] sm:$0xff]
    %v526 = vld [vmem:[#allocation5 + $0x1d0] sm:$0xff]
    %v527 = vld [vmem:[#allocation5 + $0x1d8] sm:$0xf]
    %v528 = vld [vmem:[#allocation5 + $0x1dc] sm:$0xff]
    %v529 = vld [vmem:[#allocation5 + $0x1e4] sm:$0xff]
    %v530 = vld [vmem:[#allocation5 + $0x1ec] sm:$0xff]
    %v531 = vld [vmem:[#allocation5 + $0x1f4] sm:$0xf]
    %v532 = vld [vmem:[#allocation5 + $0x1f8] sm:$0xff]
    %v533 = vld [vmem:[#allocation5 + $0x200] sm:$0xff]
    %v534 = vld [vmem:[#allocation5 + $0x208] sm:$0xff]
    %v535 = vld [vmem:[#allocation5 + $0x210] sm:$0xf]
    %v536 = vld [vmem:[#allocation5 + $0x214] sm:$0xff]
    %v537 = vld [vmem:[#allocation5 + $0x21c] sm:$0xff]
    %v538 = vld [vmem:[#allocation5 + $0x224] sm:$0xff]
    %v539 = vld [vmem:[#allocation5 + $0x22c] sm:$0xf]
    %v540 = vld [vmem:[#allocation5 + $0x230] sm:$0xff]
    %v541 = vld [vmem:[#allocation5 + $0x238] sm:$0xff]
    %v542 = vld [vmem:[#allocation5 + $0x240] sm:$0xff]
    %v543 = vld [vmem:[#allocation5 + $0x248] sm:$0xf]
    %v544 = vld [vmem:[#allocation5 + $0x24c] sm:$0xff]
    %v545 = vld [vmem:[#allocation5 + $0x254] sm:$0xff]
    %v546 = vld [vmem:[#allocation5 + $0x25c] sm:$0xff]
    %v547 = vld [vmem:[#allocation5 + $0x264] sm:$0xf]
    %v548 = vld [vmem:[#allocation5 + $0x268] sm:$0xff]
    %v549 = vld [vmem:[#allocation5 + $0x270] sm:$0xff]
    %v550 = vld [vmem:[#allocation5 + $0x278] sm:$0xff]
    %v551 = vld [vmem:[#allocation5 + $0x280] sm:$0xf]
    %v552 = vld [vmem:[#allocation5 + $0x284] sm:$0xff]
    %v553 = vld [vmem:[#allocation5 + $0x28c] sm:$0xff]
    %v554 = vld [vmem:[#allocation5 + $0x294] sm:$0xff]
    %v555 = vld [vmem:[#allocation5 + $0x29c] sm:$0xf]
    %v556 = vld [vmem:[#allocation5 + $0x2a0] sm:$0xff]
    %v557 = vld [vmem:[#allocation5 + $0x2a8] sm:$0xff]
    %v558 = vld [vmem:[#allocation5 + $0x2b0] sm:$0xff]
    %v559 = vld [vmem:[#allocation5 + $0x2b8] sm:$0xf]
    %v560 = vld [vmem:[#allocation5 + $0x2bc] sm:$0xff]
    %v561 = vld [vmem:[#allocation5 + $0x2c4] sm:$0xff]
    %v562 = vld [vmem:[#allocation5 + $0x2cc] sm:$0xff]
    %v563 = vld [vmem:[#allocation5 + $0x2d4] sm:$0xf]
    %v564 = vld [vmem:[#allocation5 + $0x2d8] sm:$0xff]
    %v565 = vld [vmem:[#allocation5 + $0x2e0] sm:$0xff]
    %v566 = vld [vmem:[#allocation5 + $0x2e8] sm:$0xff]
    %v567 = vld [vmem:[#allocation5 + $0x2f0] sm:$0xf]
    %v568 = vld [vmem:[#allocation5 + $0x2f4] sm:$0xff]
    %v569 = vld [vmem:[#allocation5 + $0x2fc] sm:$0xff]
    %v570 = vld [vmem:[#allocation5 + $0x304] sm:$0xff]
    %v571 = vld [vmem:[#allocation5 + $0x30c] sm:$0xf]
    %v572 = vld [vmem:[#allocation5 + $0x310] sm:$0xff]
    %v573 = vld [vmem:[#allocation5 + $0x318] sm:$0xff]
    %v574 = vld [vmem:[#allocation5 + $0x320] sm:$0xff]
    %v575 = vld [vmem:[#allocation5 + $0x328] sm:$0xf]
    %v576 = vld [vmem:[#allocation5 + $0x32c] sm:$0xff]
    %v577 = vld [vmem:[#allocation5 + $0x334] sm:$0xff]
    %v578 = vld [vmem:[#allocation5 + $0x33c] sm:$0xff]
    %v579 = vld [vmem:[#allocation5 + $0x344] sm:$0xf]
    %v580 = vld [vmem:[#allocation5 + $0x348] sm:$0xff]
    %v581 = vld [vmem:[#allocation5 + $0x350] sm:$0xff]
    %v582 = vld [vmem:[#allocation5 + $0x358] sm:$0xff]
    %v583 = vld [vmem:[#allocation5 + $0x360] sm:$0xf]
    %v584 = vld [vmem:[#allocation5 + $0x364] sm:$0xff]
    %v585 = vld [vmem:[#allocation5 + $0x36c] sm:$0xff]
    %v586 = vld [vmem:[#allocation5 + $0x374] sm:$0xff]
    %v587 = vld [vmem:[#allocation5 + $0x37c] sm:$0xf]
    %v588 = vld [vmem:[%s6] sm:$0xff]
    %v590 = vlaneseq
    %v591 = vshrl.u32 %v590, 7
    %v592 = vsub.s32 0, %v591
    %v593 = vrot.slane %v588, %v592
    %v594 = vlaneseq
    %v595 = vshrl.u32 %v594, 7
    %v596 = vsub.s32 1, %v595
    %v597 = vrot.slane %v588, %v596
    %v598 = vlaneseq
    %v599 = vshrl.u32 %v598, 7
    %v600 = vsub.s32 2, %v599
    %v601 = vrot.slane %v588, %v600
    %v602 = vlaneseq
    %v603 = vshrl.u32 %v602, 7
    %v604 = vsub.s32 3, %v603
    %v605 = vrot.slane %v588, %v604
    %v606 = vlaneseq
    %v607 = vshrl.u32 %v606, 7
    %v608 = vsub.s32 4, %v607
    %v609 = vrot.slane %v588, %v608
    %v610 = vlaneseq
    %v611 = vshrl.u32 %v610, 7
    %v612 = vsub.s32 5, %v611
    %v613 = vrot.slane %v588, %v612
    %v614 = vlaneseq
    %v615 = vshrl.u32 %v614, 7
    %v616 = vsub.s32 6, %v615
    %v617 = vrot.slane %v588, %v616
    %v753 = vunpack.c.l.b16 %v460
    %v754 = vunpack.c.h.b16 %v460
    %v755 = vunpack.c.l.b16 %v461
    %v756 = vunpack.c.h.b16 %v461
    %v757 = vunpack.c.l.b16 %v462
    %v758 = vunpack.c.h.b16 %v462
    %v759 = vunpack.c.l.b16 %v463
    %v760 = vunpack.c.l.b16 %v464
    %v761 = vunpack.c.h.b16 %v464
    %v762 = vunpack.c.l.b16 %v465
    %v763 = vunpack.c.h.b16 %v465
    %v764 = vunpack.c.l.b16 %v466
    %v765 = vunpack.c.h.b16 %v466
    %v766 = vunpack.c.l.b16 %v467
    %v767 = vunpack.c.l.b16 %v468
    %v768 = vunpack.c.h.b16 %v468
    %v769 = vunpack.c.l.b16 %v469
    %v770 = vunpack.c.h.b16 %v469
    %v771 = vunpack.c.l.b16 %v470
    %v772 = vunpack.c.h.b16 %v470
    %v773 = vunpack.c.l.b16 %v471
    %v774 = vunpack.c.l.b16 %v472
    %v775 = vunpack.c.h.b16 %v472
    %v776 = vunpack.c.l.b16 %v473
    %v777 = vunpack.c.h.b16 %v473
    %v778 = vunpack.c.l.b16 %v474
    %v779 = vunpack.c.h.b16 %v474
    %v780 = vunpack.c.l.b16 %v475
    %v781 = vunpack.c.l.b16 %v476
    %v782 = vunpack.c.h.b16 %v476
    %v783 = vunpack.c.l.b16 %v477
    %v784 = vunpack.c.h.b16 %v477
    %v785 = vunpack.c.l.b16 %v478
    %v786 = vunpack.c.h.b16 %v478
    %v787 = vunpack.c.l.b16 %v479
    %v788 = vunpack.c.l.b16 %v480
    %v789 = vunpack.c.h.b16 %v480
    %v790 = vunpack.c.l.b16 %v481
    %v791 = vunpack.c.h.b16 %v481
    %v792 = vunpack.c.l.b16 %v482
    %v793 = vunpack.c.h.b16 %v482
    %v794 = vunpack.c.l.b16 %v483
    %v795 = vunpack.c.l.b16 %v484
    %v796 = vunpack.c.h.b16 %v484
    %v797 = vunpack.c.l.b16 %v485
    %v798 = vunpack.c.h.b16 %v485
    %v799 = vunpack.c.l.b16 %v486
    %v800 = vunpack.c.h.b16 %v486
    %v801 = vunpack.c.l.b16 %v487
    %v802 = vunpack.c.l.b16 %v488
    %v803 = vunpack.c.h.b16 %v488
    %v804 = vunpack.c.l.b16 %v489
    %v805 = vunpack.c.h.b16 %v489
    %v806 = vunpack.c.l.b16 %v490
    %v807 = vunpack.c.h.b16 %v490
    %v808 = vunpack.c.l.b16 %v491
    %v809 = vunpack.c.l.b16 %v492
    %v810 = vunpack.c.h.b16 %v492
    %v811 = vunpack.c.l.b16 %v493
    %v812 = vunpack.c.h.b16 %v493
    %v813 = vunpack.c.l.b16 %v494
    %v814 = vunpack.c.h.b16 %v494
    %v815 = vunpack.c.l.b16 %v495
    %v816 = vunpack.c.l.b16 %v496
    %v817 = vunpack.c.h.b16 %v496
    %v818 = vunpack.c.l.b16 %v497
    %v819 = vunpack.c.h.b16 %v497
    %v820 = vunpack.c.l.b16 %v498
    %v821 = vunpack.c.h.b16 %v498
    %v822 = vunpack.c.l.b16 %v499
    %v823 = vunpack.c.l.b16 %v500
    %v824 = vunpack.c.h.b16 %v500
    %v825 = vunpack.c.l.b16 %v501
    %v826 = vunpack.c.h.b16 %v501
    %v827 = vunpack.c.l.b16 %v502
    %v828 = vunpack.c.h.b16 %v502
    %v829 = vunpack.c.l.b16 %v503
    %v830 = vunpack.c.l.b16 %v504
    %v831 = vunpack.c.h.b16 %v504
    %v832 = vunpack.c.l.b16 %v505
    %v833 = vunpack.c.h.b16 %v505
    %v834 = vunpack.c.l.b16 %v506
    %v835 = vunpack.c.h.b16 %v506
    %v836 = vunpack.c.l.b16 %v507
    %v837 = vunpack.c.l.b16 %v508
    %v838 = vunpack.c.h.b16 %v508
    %v839 = vunpack.c.l.b16 %v509
    %v840 = vunpack.c.h.b16 %v509
    %v841 = vunpack.c.l.b16 %v510
    %v842 = vunpack.c.h.b16 %v510
    %v843 = vunpack.c.l.b16 %v511
    %v844 = vunpack.c.l.b16 %v512
    %v845 = vunpack.c.h.b16 %v512
    %v846 = vunpack.c.l.b16 %v513
    %v847 = vunpack.c.h.b16 %v513
    %v848 = vunpack.c.l.b16 %v514
    %v849 = vunpack.c.h.b16 %v514
    %v850 = vunpack.c.l.b16 %v515
    %v851 = vunpack.c.l.b16 %v516
    %v852 = vunpack.c.h.b16 %v516
    %v853 = vunpack.c.l.b16 %v517
    %v854 = vunpack.c.h.b16 %v517
    %v855 = vunpack.c.l.b16 %v518
    %v856 = vunpack.c.h.b16 %v518
    %v857 = vunpack.c.l.b16 %v519
    %v858 = vunpack.c.l.b16 %v520
    %v859 = vunpack.c.h.b16 %v520
    %v860 = vunpack.c.l.b16 %v521
    %v861 = vunpack.c.h.b16 %v521
    %v862 = vunpack.c.l.b16 %v522
    %v863 = vunpack.c.h.b16 %v522
    %v864 = vunpack.c.l.b16 %v523
    %v865 = vunpack.c.l.b16 %v524
    %v866 = vunpack.c.h.b16 %v524
    %v867 = vunpack.c.l.b16 %v525
    %v868 = vunpack.c.h.b16 %v525
    %v869 = vunpack.c.l.b16 %v526
    %v870 = vunpack.c.h.b16 %v526
    %v871 = vunpack.c.l.b16 %v527
    %v872 = vunpack.c.l.b16 %v528
    %v873 = vunpack.c.h.b16 %v528
    %v874 = vunpack.c.l.b16 %v529
    %v875 = vunpack.c.h.b16 %v529
    %v876 = vunpack.c.l.b16 %v530
    %v877 = vunpack.c.h.b16 %v530
    %v878 = vunpack.c.l.b16 %v531
    %v879 = vunpack.c.l.b16 %v532
    %v880 = vunpack.c.h.b16 %v532
    %v881 = vunpack.c.l.b16 %v533
    %v882 = vunpack.c.h.b16 %v533
    %v883 = vunpack.c.l.b16 %v534
    %v884 = vunpack.c.h.b16 %v534
    %v885 = vunpack.c.l.b16 %v535
    %v886 = vunpack.c.l.b16 %v536
    %v887 = vunpack.c.h.b16 %v536
    %v888 = vunpack.c.l.b16 %v537
    %v889 = vunpack.c.h.b16 %v537
    %v890 = vunpack.c.l.b16 %v538
    %v891 = vunpack.c.h.b16 %v538
    %v892 = vunpack.c.l.b16 %v539
    %v893 = vunpack.c.l.b16 %v540
    %v894 = vunpack.c.h.b16 %v540
    %v895 = vunpack.c.l.b16 %v541
    %v896 = vunpack.c.h.b16 %v541
    %v897 = vunpack.c.l.b16 %v542
    %v898 = vunpack.c.h.b16 %v542
    %v899 = vunpack.c.l.b16 %v543
    %v900 = vunpack.c.l.b16 %v544
    %v901 = vunpack.c.h.b16 %v544
    %v902 = vunpack.c.l.b16 %v545
    %v903 = vunpack.c.h.b16 %v545
    %v904 = vunpack.c.l.b16 %v546
    %v905 = vunpack.c.h.b16 %v546
    %v906 = vunpack.c.l.b16 %v547
    %v907 = vunpack.c.l.b16 %v548
    %v908 = vunpack.c.h.b16 %v548
    %v909 = vunpack.c.l.b16 %v549
    %v910 = vunpack.c.h.b16 %v549
    %v911 = vunpack.c.l.b16 %v550
    %v912 = vunpack.c.h.b16 %v550
    %v913 = vunpack.c.l.b16 %v551
    %v914 = vunpack.c.l.b16 %v552
    %v915 = vunpack.c.h.b16 %v552
    %v916 = vunpack.c.l.b16 %v553
    %v917 = vunpack.c.h.b16 %v553
    %v918 = vunpack.c.l.b16 %v554
    %v919 = vunpack.c.h.b16 %v554
    %v920 = vunpack.c.l.b16 %v555
    %v921 = vunpack.c.l.b16 %v556
    %v922 = vunpack.c.h.b16 %v556
    %v923 = vunpack.c.l.b16 %v557
    %v924 = vunpack.c.h.b16 %v557
    %v925 = vunpack.c.l.b16 %v558
    %v926 = vunpack.c.h.b16 %v558
    %v927 = vunpack.c.l.b16 %v559
    %v928 = vunpack.c.l.b16 %v560
    %v929 = vunpack.c.h.b16 %v560
    %v930 = vunpack.c.l.b16 %v561
    %v931 = vunpack.c.h.b16 %v561
    %v932 = vunpack.c.l.b16 %v562
    %v933 = vunpack.c.h.b16 %v562
    %v934 = vunpack.c.l.b16 %v563
    %v935 = vunpack.c.l.b16 %v564
    %v936 = vunpack.c.h.b16 %v564
    %v937 = vunpack.c.l.b16 %v565
    %v938 = vunpack.c.h.b16 %v565
    %v939 = vunpack.c.l.b16 %v566
    %v940 = vunpack.c.h.b16 %v566
    %v941 = vunpack.c.l.b16 %v567
    %v942 = vunpack.c.l.b16 %v568
    %v943 = vunpack.c.h.b16 %v568
    %v944 = vunpack.c.l.b16 %v569
    %v945 = vunpack.c.h.b16 %v569
    %v946 = vunpack.c.l.b16 %v570
    %v947 = vunpack.c.h.b16 %v570
    %v948 = vunpack.c.l.b16 %v571
    %v949 = vunpack.c.l.b16 %v572
    %v950 = vunpack.c.h.b16 %v572
    %v951 = vunpack.c.l.b16 %v573
    %v952 = vunpack.c.h.b16 %v573
    %v953 = vunpack.c.l.b16 %v574
    %v954 = vunpack.c.h.b16 %v574
    %v955 = vunpack.c.l.b16 %v575
    %v956 = vunpack.c.l.b16 %v576
    %v957 = vunpack.c.h.b16 %v576
    %v958 = vunpack.c.l.b16 %v577
    %v959 = vunpack.c.h.b16 %v577
    %v960 = vunpack.c.l.b16 %v578
    %v961 = vunpack.c.h.b16 %v578
    %v962 = vunpack.c.l.b16 %v579
    %v963 = vunpack.c.l.b16 %v580
    %v964 = vunpack.c.h.b16 %v580
    %v965 = vunpack.c.l.b16 %v581
    %v966 = vunpack.c.h.b16 %v581
    %v967 = vunpack.c.l.b16 %v582
    %v968 = vunpack.c.h.b16 %v582
    %v969 = vunpack.c.l.b16 %v583
    %v970 = vunpack.c.l.b16 %v584
    %v971 = vunpack.c.h.b16 %v584
    %v972 = vunpack.c.l.b16 %v585
    %v973 = vunpack.c.h.b16 %v585
    %v974 = vunpack.c.l.b16 %v586
    %v975 = vunpack.c.h.b16 %v586
    %v976 = vunpack.c.l.b16 %v587
    %v977 = vpack.c.b16 %v760, %v753
    %v978 = vpack.c.b16 %v761, %v754
    %v979 = vpack.c.b16 %v762, %v755
    %v980 = vpack.c.b16 %v763, %v756
    %v981 = vpack.c.b16 %v764, %v757
    %v982 = vpack.c.b16 %v765, %v758
    %v983 = vpack.c.b16 %v766, %v759
    %v984 = vpack.c.b16 %v774, %v767
    %v985 = vpack.c.b16 %v775, %v768
    %v986 = vpack.c.b16 %v776, %v769
    %v987 = vpack.c.b16 %v777, %v770
    %v988 = vpack.c.b16 %v778, %v771
    %v989 = vpack.c.b16 %v779, %v772
    %v990 = vpack.c.b16 %v780, %v773
    %v991 = vpack.c.b16 %v788, %v781
    %v992 = vpack.c.b16 %v789, %v782
    %v993 = vpack.c.b16 %v790, %v783
    %v994 = vpack.c.b16 %v791, %v784
    %v995 = vpack.c.b16 %v792, %v785
    %v996 = vpack.c.b16 %v793, %v786
    %v997 = vpack.c.b16 %v794, %v787
    %v998 = vpack.c.b16 %v802, %v795
    %v999 = vpack.c.b16 %v803, %v796
    %v1000 = vpack.c.b16 %v804, %v797
    %v1001 = vpack.c.b16 %v805, %v798
    %v1002 = vpack.c.b16 %v806, %v799
    %v1003 = vpack.c.b16 %v807, %v800
    %v1004 = vpack.c.b16 %v808, %v801
    %v1005 = vpack.c.b16 %v816, %v809
    %v1006 = vpack.c.b16 %v817, %v810
    %v1007 = vpack.c.b16 %v818, %v811
    %v1008 = vpack.c.b16 %v819, %v812
    %v1009 = vpack.c.b16 %v820, %v813
    %v1010 = vpack.c.b16 %v821, %v814
    %v1011 = vpack.c.b16 %v822, %v815
    %v1012 = vpack.c.b16 %v830, %v823
    %v1013 = vpack.c.b16 %v831, %v824
    %v1014 = vpack.c.b16 %v832, %v825
    %v1015 = vpack.c.b16 %v833, %v826
    %v1016 = vpack.c.b16 %v834, %v827
    %v1017 = vpack.c.b16 %v835, %v828
    %v1018 = vpack.c.b16 %v836, %v829
    %v1019 = vpack.c.b16 %v844, %v837
    %v1020 = vpack.c.b16 %v845, %v838
    %v1021 = vpack.c.b16 %v846, %v839
    %v1022 = vpack.c.b16 %v847, %v840
    %v1023 = vpack.c.b16 %v848, %v841
    %v1024 = vpack.c.b16 %v849, %v842
    %v1025 = vpack.c.b16 %v850, %v843
    %v1026 = vpack.c.b16 %v858, %v851
    %v1027 = vpack.c.b16 %v859, %v852
    %v1028 = vpack.c.b16 %v860, %v853
    %v1029 = vpack.c.b16 %v861, %v854
    %v1030 = vpack.c.b16 %v862, %v855
    %v1031 = vpack.c.b16 %v863, %v856
    %v1032 = vpack.c.b16 %v864, %v857
    %v1033 = vpack.c.b16 %v872, %v865
    %v1034 = vpack.c.b16 %v873, %v866
    %v1035 = vpack.c.b16 %v874, %v867
    %v1036 = vpack.c.b16 %v875, %v868
    %v1037 = vpack.c.b16 %v876, %v869
    %v1038 = vpack.c.b16 %v877, %v870
    %v1039 = vpack.c.b16 %v878, %v871
    %v1040 = vpack.c.b16 %v886, %v879
    %v1041 = vpack.c.b16 %v887, %v880
    %v1042 = vpack.c.b16 %v888, %v881
    %v1043 = vpack.c.b16 %v889, %v882
    %v1044 = vpack.c.b16 %v890, %v883
    %v1045 = vpack.c.b16 %v891, %v884
    %v1046 = vpack.c.b16 %v892, %v885
    %v1047 = vpack.c.b16 %v900, %v893
    %v1048 = vpack.c.b16 %v901, %v894
    %v1049 = vpack.c.b16 %v902, %v895
    %v1050 = vpack.c.b16 %v903, %v896
    %v1051 = vpack.c.b16 %v904, %v897
    %v1052 = vpack.c.b16 %v905, %v898
    %v1053 = vpack.c.b16 %v906, %v899
    %v1054 = vpack.c.b16 %v914, %v907
    %v1055 = vpack.c.b16 %v915, %v908
    %v1056 = vpack.c.b16 %v916, %v909
    %v1057 = vpack.c.b16 %v917, %v910
    %v1058 = vpack.c.b16 %v918, %v911
    %v1059 = vpack.c.b16 %v919, %v912
    %v1060 = vpack.c.b16 %v920, %v913
    %v1061 = vpack.c.b16 %v928, %v921
    %v1062 = vpack.c.b16 %v929, %v922
    %v1063 = vpack.c.b16 %v930, %v923
    %v1064 = vpack.c.b16 %v931, %v924
    %v1065 = vpack.c.b16 %v932, %v925
    %v1066 = vpack.c.b16 %v933, %v926
    %v1067 = vpack.c.b16 %v934, %v927
    %v1068 = vpack.c.b16 %v942, %v935
    %v1069 = vpack.c.b16 %v943, %v936
    %v1070 = vpack.c.b16 %v944, %v937
    %v1071 = vpack.c.b16 %v945, %v938
    %v1072 = vpack.c.b16 %v946, %v939
    %v1073 = vpack.c.b16 %v947, %v940
    %v1074 = vpack.c.b16 %v948, %v941
    %v1075 = vpack.c.b16 %v956, %v949
    %v1076 = vpack.c.b16 %v957, %v950
    %v1077 = vpack.c.b16 %v958, %v951
    %v1078 = vpack.c.b16 %v959, %v952
    %v1079 = vpack.c.b16 %v960, %v953
    %v1080 = vpack.c.b16 %v961, %v954
    %v1081 = vpack.c.b16 %v962, %v955
    %v1082 = vpack.c.b16 %v970, %v963
    %v1083 = vpack.c.b16 %v971, %v964
    %v1084 = vpack.c.b16 %v972, %v965
    %v1085 = vpack.c.b16 %v973, %v966
    %v1086 = vpack.c.b16 %v974, %v967
    %v1087 = vpack.c.b16 %v975, %v968
    %v1088 = vpack.c.b16 %v976, %v969
    %1201 = vmatprep.subr.bf16.mxu0 %v978
    %1202 = vmatpush1.bf16.msra.mxu0 %v977
    %1203 = vmatprep.subr.bf16.mxu0 %v985
    %1204 = vmatpush1.bf16.msra.mxu0 %v984
    %1205 = vmatprep.subr.bf16.mxu0 %v992
    %1206 = vmatpush1.bf16.msra.mxu0 %v991
    %1207 = vmatprep.subr.bf16.mxu0 %v999
    %1208 = vmatpush1.bf16.msra.mxu0 %v998
    %1209 = vmatprep.subr.bf16.mxu0 %v1006
    %1210 = vmatpush1.bf16.msra.mxu0 %v1005
    %1211 = vmatprep.subr.bf16.mxu0 %v1013
    %1212 = vmatpush1.bf16.msra.mxu0 %v1012
    %1213 = vmatprep.subr.bf16.mxu0 %v1020
    %1214 = vmatpush1.bf16.msra.mxu0 %v1019
    %1215 = vmatprep.subr.bf16.mxu0 %v1027
    %1216 = vmatpush1.bf16.msra.mxu0 %v1026
    %1217 = vmatprep.subr.bf16.mxu0 %v1034
    %1218 = vmatpush1.bf16.msra.mxu0 %v1033
    %1219 = vmatprep.subr.bf16.mxu0 %v1041
    %1220 = vmatpush1.bf16.msra.mxu0 %v1040
    %1221 = vmatprep.subr.bf16.mxu0 %v1048
    %1222 = vmatpush1.bf16.msra.mxu0 %v1047
    %1223 = vmatprep.subr.bf16.mxu0 %v1055
    %1224 = vmatpush1.bf16.msra.mxu0 %v1054
    %1225 = vmatprep.subr.bf16.mxu0 %v1062
    %1226 = vmatpush1.bf16.msra.mxu0 %v1061
    %1227 = vmatprep.subr.bf16.mxu0 %v1069
    %1228 = vmatpush1.bf16.msra.mxu0 %v1068
    %1229 = vmatprep.subr.bf16.mxu0 %v1076
    %1230 = vmatpush1.bf16.msra.mxu0 %v1075
    %1231 = vmatprep.subr.bf16.mxu0 %v1083
    %1232 = vmatpush1.bf16.msra.mxu0 %v1082
    %1233 = vmatprep.mubr.bf16.mxu0 %v457
    %1234 = vmatmul.mubr.bf16.gmra.mrb[0].mxu0 %v456
    %v1235 = vpop.f32.mrb[0].mxu0
    %v1236 = vadd.f32 %v593, %v1235
    %v1237 = vpop.f32.mrb[0].mxu0
    %v1238 = vadd.f32 %v597, %v1237
    %v1239 = vpop.f32.mrb[0].mxu0
    %v1240 = vadd.f32 %v593, %v1239
    %v1241 = vpop.f32.mrb[0].mxu0
    %v1242 = vadd.f32 %v597, %v1241
    %1243 = vmatprep.mubr.bf16.mxu0 %v459
    %1244 = vmatmul.mubr.bf16.gmra.mrb[0].mxu0 %v458
    %v1245 = vpop.f32.mrb[0].mxu0
    %v1246 = vadd.f32 %v593, %v1245
    %v1247 = vpop.f32.mrb[0].mxu0
    %v1248 = vadd.f32 %v597, %v1247
    %v1249 = vpop.f32.mrb[0].mxu0
    %v1250 = vpop.f32.mrb[0].mxu0
    %1251 = vdwg.mxu0
    %1252 = vmatprep.subr.bf16.mxu0 %v980
    %1253 = vmatpush1.bf16.msra.mxu0 %v979
    %1254 = vmatprep.subr.bf16.mxu0 %v987
    %1255 = vmatpush1.bf16.msra.mxu0 %v986
    %1256 = vmatprep.subr.bf16.mxu0 %v994
    %1257 = vmatpush1.bf16.msra.mxu0 %v993
    %1258 = vmatprep.subr.bf16.mxu0 %v1001
    %1259 = vmatpush1.bf16.msra.mxu0 %v1000
    %1260 = vmatprep.subr.bf16.mxu0 %v1008
    %1261 = vmatpush1.bf16.msra.mxu0 %v1007
    %1262 = vmatprep.subr.bf16.mxu0 %v1015
    %1263 = vmatpush1.bf16.msra.mxu0 %v1014
    %1264 = vmatprep.subr.bf16.mxu0 %v1022
    %1265 = vmatpush1.bf16.msra.mxu0 %v1021
    %1266 = vmatprep.subr.bf16.mxu0 %v1029
    %1267 = vmatpush1.bf16.msra.mxu0 %v1028
    %1268 = vmatprep.subr.bf16.mxu0 %v1036
    %1269 = vmatpush1.bf16.msra.mxu0 %v1035
    %1270 = vmatprep.subr.bf16.mxu0 %v1043
    %1271 = vmatpush1.bf16.msra.mxu0 %v1042
    %1272 = vmatprep.subr.bf16.mxu0 %v1050
    %1273 = vmatpush1.bf16.msra.mxu0 %v1049
    %1274 = vmatprep.subr.bf16.mxu0 %v1057
    %1275 = vmatpush1.bf16.msra.mxu0 %v1056
    %1276 = vmatprep.subr.bf16.mxu0 %v1064
    %1277 = vmatpush1.bf16.msra.mxu0 %v1063
    %1278 = vmatprep.subr.bf16.mxu0 %v1071
    %1279 = vmatpush1.bf16.msra.mxu0 %v1070
    %1280 = vmatprep.subr.bf16.mxu0 %v1078
    %1281 = vmatpush1.bf16.msra.mxu0 %v1077
    %1282 = vmatprep.subr.bf16.mxu0 %v1085
    %1283 = vmatpush1.bf16.msra.mxu0 %v1084
    %1284 = vmatprep.mubr.bf16.mxu0 %v457
    %1285 = vmatmul.mubr.bf16.gmra.mrb[0].mxu0 %v456
    %v1286 = vpop.f32.mrb[0].mxu0
    %v1287 = vadd.f32 %v601, %v1286
    %v1288 = vpop.f32.mrb[0].mxu0
    %v1289 = vadd.f32 %v605, %v1288
    %v1290 = vpop.f32.mrb[0].mxu0
    %v1291 = vadd.f32 %v601, %v1290
    %v1292 = vpop.f32.mrb[0].mxu0
    %v1293 = vadd.f32 %v605, %v1292
    %1294 = vmatprep.mubr.bf16.mxu0 %v459
    %1295 = vmatmul.mubr.bf16.gmra.mrb[0].mxu0 %v458
    %v1296 = vpop.f32.mrb[0].mxu0
    %v1297 = vadd.f32 %v601, %v1296
    %v1298 = vpop.f32.mrb[0].mxu0
    %v1299 = vadd.f32 %v605, %v1298
    %v1300 = vpop.f32.mrb[0].mxu0
    %v1301 = vpop.f32.mrb[0].mxu0
    %1302 = vdwg.mxu0
    %1303 = vmatprep.subr.bf16.mxu0 %v982
    %1304 = vmatpush1.bf16.msra.mxu0 %v981
    %1305 = vmatprep.subr.bf16.mxu0 %v989
    %1306 = vmatpush1.bf16.msra.mxu0 %v988
    %1307 = vmatprep.subr.bf16.mxu0 %v996
    %1308 = vmatpush1.bf16.msra.mxu0 %v995
    %1309 = vmatprep.subr.bf16.mxu0 %v1003
    %1310 = vmatpush1.bf16.msra.mxu0 %v1002
    %1311 = vmatprep.subr.bf16.mxu0 %v1010
    %1312 = vmatpush1.bf16.msra.mxu0 %v1009
    %1313 = vmatprep.subr.bf16.mxu0 %v1017
    %1314 = vmatpush1.bf16.msra.mxu0 %v1016
    %1315 = vmatprep.subr.bf16.mxu0 %v1024
    %1316 = vmatpush1.bf16.msra.mxu0 %v1023
    %1317 = vmatprep.subr.bf16.mxu0 %v1031
    %1318 = vmatpush1.bf16.msra.mxu0 %v1030
    %1319 = vmatprep.subr.bf16.mxu0 %v1038
    %1320 = vmatpush1.bf16.msra.mxu0 %v1037
    %1321 = vmatprep.subr.bf16.mxu0 %v1045
    %1322 = vmatpush1.bf16.msra.mxu0 %v1044
    %1323 = vmatprep.subr.bf16.mxu0 %v1052
    %1324 = vmatpush1.bf16.msra.mxu0 %v1051
    %1325 = vmatprep.subr.bf16.mxu0 %v1059
    %1326 = vmatpush1.bf16.msra.mxu0 %v1058
    %1327 = vmatprep.subr.bf16.mxu0 %v1066
    %1328 = vmatpush1.bf16.msra.mxu0 %v1065
    %1329 = vmatprep.subr.bf16.mxu0 %v1073
    %1330 = vmatpush1.bf16.msra.mxu0 %v1072
    %1331 = vmatprep.subr.bf16.mxu0 %v1080
    %1332 = vmatpush1.bf16.msra.mxu0 %v1079
    %1333 = vmatprep.subr.bf16.mxu0 %v1087
    %1334 = vmatpush1.bf16.msra.mxu0 %v1086
    %1335 = vmatprep.mubr.bf16.mxu0 %v457
    %1336 = vmatmul.mubr.bf16.gmra.mrb[0].mxu0 %v456
    %v1337 = vpop.f32.mrb[0].mxu0
    %v1338 = vadd.f32 %v609, %v1337
    %v1339 = vpop.f32.mrb[0].mxu0
    %v1340 = vadd.f32 %v613, %v1339
    %v1341 = vpop.f32.mrb[0].mxu0
    %v1342 = vadd.f32 %v609, %v1341
    %v1343 = vpop.f32.mrb[0].mxu0
    %v1344 = vadd.f32 %v613, %v1343
    %1345 = vmatprep.mubr.bf16.mxu0 %v459
    %1346 = vmatmul.mubr.bf16.gmra.mrb[0].mxu0 %v458
    %v1347 = vpop.f32.mrb[0].mxu0
    %v1348 = vadd.f32 %v609, %v1347
    %v1349 = vpop.f32.mrb[0].mxu0
    %v1350 = vadd.f32 %v613, %v1349
    %v1351 = vpop.f32.mrb[0].mxu0
    %v1352 = vpop.f32.mrb[0].mxu0
    %1353 = vdwg.mxu0
    %1354 = vmatprep.subr.bf16.mxu0 0
    %1355 = vmatpush1.bf16.msra.mxu0 %v983
    %1356 = vmatprep.subr.bf16.mxu0 0
    %1357 = vmatpush1.bf16.msra.mxu0 %v990
    %1358 = vmatprep.subr.bf16.mxu0 0
    %1359 = vmatpush1.bf16.msra.mxu0 %v997
    %1360 = vmatprep.subr.bf16.mxu0 0
    %1361 = vmatpush1.bf16.msra.mxu0 %v1004
    %1362 = vmatprep.subr.bf16.mxu0 0
    %1363 = vmatpush1.bf16.msra.mxu0 %v1011
    %1364 = vmatprep.subr.bf16.mxu0 0
    %1365 = vmatpush1.bf16.msra.mxu0 %v1018
    %1366 = vmatprep.subr.bf16.mxu0 0
    %1367 = vmatpush1.bf16.msra.mxu0 %v1025
    %1368 = vmatprep.subr.bf16.mxu0 0
    %1369 = vmatpush1.bf16.msra.mxu0 %v1032
    %1370 = vmatprep.subr.bf16.mxu0 0
    %1371 = vmatpush1.bf16.msra.mxu0 %v1039
    %1372 = vmatprep.subr.bf16.mxu0 0
    %1373 = vmatpush1.bf16.msra.mxu0 %v1046
    %1374 = vmatprep.subr.bf16.mxu0 0
    %1375 = vmatpush1.bf16.msra.mxu0 %v1053
    %1376 = vmatprep.subr.bf16.mxu0 0
    %1377 = vmatpush1.bf16.msra.mxu0 %v1060
    %1378 = vmatprep.subr.bf16.mxu0 0
    %1379 = vmatpush1.bf16.msra.mxu0 %v1067
    %1380 = vmatprep.subr.bf16.mxu0 0
    %1381 = vmatpush1.bf16.msra.mxu0 %v1074
    %1382 = vmatprep.subr.bf16.mxu0 0
    %1383 = vmatpush1.bf16.msra.mxu0 %v1081
    %1384 = vmatprep.subr.bf16.mxu0 0
    %1385 = vmatpush1.bf16.msra.mxu0 %v1088
    %1386 = vmatprep.mubr.bf16.mxu0 %v457
    %1387 = vmatmul.mubr.bf16.gmra.mrb[0].mxu0 %v456
    %v1388 = vpop.f32.mrb[0].mxu0
    %v1389 = vadd.f32 %v617, %v1388
    %v1390 = vpop.f32.mrb[0].mxu0
    %v1391 = vpop.f32.mrb[0].mxu0
    %v1392 = vadd.f32 %v617, %v1391
    %v1393 = vpop.f32.mrb[0].mxu0
    %1394 = vmatprep.mubr.bf16.mxu0 %v459
    %1395 = vmatmul.mubr.bf16.gmra.mrb[0].mxu0 %v458
    %v1396 = vpop.f32.mrb[0].mxu0
    %v1397 = vadd.f32 %v617, %v1396
    %v1398 = vpop.f32.mrb[0].mxu0
    %v1399 = vpop.f32.mrb[0].mxu0
    %v1400 = vpop.f32.mrb[0].mxu0
    %1401 = vdwg.mxu0
    %v1402 = vtanh.pop %v1236
    %v1403 = vtanh.pop %v1238
    %v1404 = vtanh.pop %v1287
    %v1405 = vtanh.pop %v1289
    %v1406 = vtanh.pop %v1338
    %v1407 = vtanh.pop %v1340
    %v1408 = vtanh.pop %v1389
    %v1409 = vtanh.pop %v1240
    %v1410 = vtanh.pop %v1242
    %v1411 = vtanh.pop %v1291
    %v1412 = vtanh.pop %v1293
    %v1413 = vtanh.pop %v1342
    %v1414 = vtanh.pop %v1344
    %v1415 = vtanh.pop %v1392
    %v1416 = vtanh.pop %v1246
    %v1417 = vtanh.pop %v1248
    %v1418 = vtanh.pop %v1297
    %v1419 = vtanh.pop %v1299
    %v1420 = vtanh.pop %v1348
    %v1421 = vtanh.pop %v1350
    %v1422 = vtanh.pop %v1397
    %v1423 = vpack.c.bf16 %v1409, %v1402
    %v1424 = vpack.c.bf16 %v1410, %v1403
    %v1425 = vpack.c.bf16 %v1411, %v1404
    %v1426 = vpack.c.bf16 %v1412, %v1405
    %v1427 = vpack.c.bf16 %v1413, %v1406
    %v1428 = vpack.c.bf16 %v1414, %v1407
    %v1429 = vpack.c.bf16 %v1415, %v1408
    %v1430 = vpack.c.bf16 %v1416, %v1416
    %v1431 = vpack.c.bf16 %v1417, %v1417
    %v1432 = vpack.c.bf16 %v1418, %v1418
    %v1433 = vpack.c.bf16 %v1419, %v1419
    %v1434 = vpack.c.bf16 %v1420, %v1420
    %v1435 = vpack.c.bf16 %v1421, %v1421
    %v1436 = vpack.c.bf16 %v1422, %v1422
    %v1451 = vunpack.c.l.b16 %v1423
    %v1452 = vunpack.c.l.b16 %v1424
    %v1453 = vunpack.c.l.b16 %v1425
    %v1454 = vunpack.c.l.b16 %v1426
    %v1455 = vunpack.c.l.b16 %v1427
    %v1456 = vunpack.c.l.b16 %v1428
    %v1457 = vunpack.c.l.b16 %v1429
    %v1458 = vunpack.c.h.b16 %v1423
    %v1459 = vunpack.c.h.b16 %v1424
    %v1460 = vunpack.c.h.b16 %v1425
    %v1461 = vunpack.c.h.b16 %v1426
    %v1462 = vunpack.c.h.b16 %v1427
    %v1463 = vunpack.c.h.b16 %v1428
    %v1464 = vunpack.c.h.b16 %v1429
    %v1465 = vunpack.c.l.b16 %v1430
    %v1466 = vunpack.c.l.b16 %v1431
    %v1467 = vunpack.c.l.b16 %v1432
    %v1468 = vunpack.c.l.b16 %v1433
    %v1469 = vunpack.c.l.b16 %v1434
    %v1470 = vunpack.c.l.b16 %v1435
    %v1471 = vunpack.c.l.b16 %v1436
    %v1472 = vpack.c.b16 %v1452, %v1451
    %v1473 = vpack.c.b16 %v1454, %v1453
    %v1474 = vpack.c.b16 %v1456, %v1455
    %v1475 = vpack.c.b16 %v1457, %v1457
    %v1476 = vpack.c.b16 %v1459, %v1458
    %v1477 = vpack.c.b16 %v1461, %v1460
    %v1478 = vpack.c.b16 %v1463, %v1462
    %v1479 = vpack.c.b16 %v1464, %v1464
    %v1480 = vpack.c.b16 %v1466, %v1465
    %v1481 = vpack.c.b16 %v1468, %v1467
    %v1482 = vpack.c.b16 %v1470, %v1469
    %v1483 = vpack.c.b16 %v1471, %v1471
    %1496 = vst [vmem:[#allocation7] sm:$0xff] %v1472
    %1497 = vst [vmem:[#allocation7 + $0x8] sm:$0xff] %v1473
    %1498 = vst [vmem:[#allocation7 + $0x10] sm:$0xff] %v1474
    %1499 = vst [vmem:[#allocation7 + $0x18] sm:$0xf] %v1475
    %1500 = vst [vmem:[#allocation7 + $0x1c] sm:$0xff] %v1476
    %1501 = vst [vmem:[#allocation7 + $0x24] sm:$0xff] %v1477
    %1502 = vst [vmem:[#allocation7 + $0x2c] sm:$0xff] %v1478
    %1503 = vst [vmem:[#allocation7 + $0x34] sm:$0xf] %v1479
    %1504 = vst [vmem:[#allocation7 + $0x38] sm:$0xff] %v1480
    %1505 = vst [vmem:[#allocation7 + $0x40] sm:$0xff] %v1481
    %1506 = vst [vmem:[#allocation7 + $0x48] sm:$0xff] %v1482
    %1507 = vst [vmem:[#allocation7 + $0x50] sm:$0xf] %v1483
    // Predicated region
    $region38: #{generator_forward.1} parent=1 // pred_check
      _
    $region39: #{generator_forward.1} parent=1 // pred_check_branch
      %1509 = sbr.rel (0) target = $region41
    $region40: #{generator_forward.1} parent=1 // pred_region
      %s1511 = ssub.s32 1344, 1344
      %1512 = vsyncadd [#allocation4], %s1511
      %s1513 = sshll.u32 [#allocation7], 4
      %s1514 = int_to_ptr.vmem [resolvable:$true] %s1513
      %1519 = dma.vmem_to_hbm [thread:$0]  %s1514, 1344, %s7, [#allocation4], 448, 448, 28
    $region41: #{generator_forward.1} parent=1 // pred_fallthru
      _
    // Predicated region
    $region42: #{generator_forward.1} parent=1 // pred_check
      _
    $region43: #{generator_forward.1} parent=1 // pred_check_branch
      %1521 = sbr.rel (0) target = $region45
    $region44: #{generator_forward.1} parent=1 // pred_region
      %1522 = dma.done [#allocation4], 1344
    $region45: #{generator_forward.1} parent=1 // pred_fallthru
      _
    %1523 = vsyncpa [#allocation3], 1
    %1524 = vsyncpa [#allocation6], 1
    %1525 = vsyncpa [#allocation4], 1

</llo_original>
